<compile_context>
chip_gen: v7x
topology: tpu7x:2x2x1
jax: 0.10.0
libtpu: 0.0.40
codegen_flags: <defaults>
</compile_context>

<pallas_src>
import functools

import numpy as np

import jax
import jax.numpy as jnp
from jax import lax
from jax.experimental import pallas as pl
from jax.experimental.pallas import tpu as pltpu


_LANE = 128        # TPU lane width
_SUBLANE = 8       # TPU sublane width
_TB_TARGET = 128   # target sequences per grid step


def _round_up(x, m):
    return (x + m - 1) // m * m


def _pick_batch_tile(b):
    """Batch tile: big enough to amortize the ~0.35us/step overhead, but keep
    at least two grid steps when possible so v7x's 2 TensorCores both work."""
    b8 = _round_up(max(b, 1), _SUBLANE)
    tb = min(_TB_TARGET, b8)
    if b8 > _SUBLANE and (b8 + tb - 1) // tb < 2:
        tb = _round_up((b8 + 1) // 2, _SUBLANE)
    return tb


# ----------------------------- Pallas kernel ------------------------------ #
def _cnn_forward_kernel(x_ref, thresh_ref, wconv_ref, bconv_ref,
                        wfc_ref, bfc_ref, out_ref):
    """Fused Conv1d(all branches) + ReLU + max-over-time + Linear, one tile.

    x_ref     : [TB, Lr, ks_max*E] bf16  im2col'd activations
    thresh_ref: [1, KN_PAD]        int32 last valid conv position (L - ks) per
                                   channel; padded channels are negative.
    wconv_ref : [ks_max*E, KN_PAD] bf16  fused conv weights (zero-padded)
    bconv_ref : [1, KN_PAD]        f32   fused conv bias
    wfc_ref   : [KN_PAD, C_PAD]    f32   FC weight (zero-padded rows/cols)
    bfc_ref   : [1, C_PAD]         f32   FC bias (zero-padded)
    out_ref   : [TB, C_PAD]        f32   lane-dense logits tile
    """
    tb, lr, _ = x_ref.shape
    kn_pad = wconv_ref.shape[1]

    # All taps & branches in a single K = ks_max*E matmul (bf16 in, f32 acc).
    lhs = x_ref[...].reshape(tb * lr, x_ref.shape[2])
    acc = jnp.dot(lhs, wconv_ref[...], preferred_element_type=jnp.float32)

    conv = jnp.maximum(acc + bconv_ref[...], 0.0)            # bias + ReLU (f32)
    conv = conv.reshape(tb, lr, kn_pad)

    # Validity mask generated in-kernel (VPU compare), not streamed from HBM:
    # position t of channel c is valid iff t <= L - ks(c).
    t_idx = lax.broadcasted_iota(jnp.int32, (tb, lr, kn_pad), 1)
    valid = t_idx <= thresh_ref[...].reshape(1, 1, kn_pad)
    # ReLU output >= 0, so masked zeros never win the max (if the activation
    # ever changes to one that can go negative, switch the fill to -inf).
    conv = jnp.where(valid, conv, 0.0)

    pooled = jnp.max(conv, axis=1)                           # [TB, KN_PAD]

    # Final linear layer (tiny; kept f32), lane-dense output slab.
    out_ref[...] = (jnp.dot(pooled, wfc_ref[...],
                            preferred_element_type=jnp.float32)
                    + bfc_ref[...])


# ------------------------------ parameters -------------------------------- #
def init_params(key, dict_size, embedding_dim, num_classes,
                kernel_nums=(3, 4, 5), kernel_sizes=(3, 4, 5)):
    """Deterministic synthetic parameters (shapes match the PyTorch module)."""
    keys = jax.random.split(key, 4 + 2 * len(kernel_nums))
    params = {}
    params["embed"] = jax.random.normal(
        keys[0], (dict_size, embedding_dim), jnp.float32)   # nn.Embedding

    conv_ws, conv_bs = [], []
    for i, (kn, ks) in enumerate(zip(kernel_nums, kernel_sizes)):
        # PyTorch Conv1d weight shape: [out_channels, in_channels, ks]
        scale = 1.0 / jnp.sqrt(embedding_dim * ks)
        conv_ws.append(scale * jax.random.normal(
            keys[1 + 2 * i], (kn, embedding_dim, ks), jnp.float32))
        conv_bs.append(scale * jax.random.normal(
            keys[2 + 2 * i], (kn,), jnp.float32))
    params["conv_w"] = conv_ws
    params["conv_b"] = conv_bs

    feat_dim = sum(kernel_nums)
    scale = 1.0 / jnp.sqrt(feat_dim)
    # PyTorch Linear weight shape: [num_classes, feat_dim]
    params["fc_w"] = scale * jax.random.normal(
        keys[-2], (num_classes, feat_dim), jnp.float32)
    params["fc_b"] = scale * jax.random.normal(
        keys[-1], (num_classes,), jnp.float32)
    return params


def prepare_model(params, kernel_nums=(3, 4, 5), kernel_sizes=(3, 4, 5)):
    """One-time packing of the PyTorch-style parameters into kernel layouts.

    Hoisted out of the per-call path: none of this depends on `words`, so the
    scatters / transposes / pads run once, not on every forward call.
    """
    E = params["embed"].shape[1]
    KN = sum(kernel_nums)
    C = params["fc_w"].shape[0]
    ks_max = max(kernel_sizes)
    KN_PAD = _round_up(max(KN, 1), _LANE)
    C_PAD = _round_up(max(C, 1), _LANE)
    K_IN = ks_max * E

    # Fused conv weight: w_big[k*E + e, off + o] = conv_w[branch][o, e, k],
    # zero for taps k >= ks(branch) and for padded channel columns.
    w_big = np.zeros((K_IN, KN_PAD), np.float32)
    b_conv = np.zeros((1, KN_PAD), np.float32)
    ks_row = np.full((1, KN_PAD), 1_000_000, np.int32)   # padded cols: never valid
    off = 0
    for w, b, kn, ks in zip(params["conv_w"], params["conv_b"],
                            kernel_nums, kernel_sizes):
        w_np = np.asarray(w, np.float32)                         # [kn, E, ks]
        wt = np.transpose(w_np, (2, 1, 0)).reshape(ks * E, kn)   # row = k*E + e
        w_big[:ks * E, off:off + kn] = wt
        b_conv[0, off:off + kn] = np.asarray(b, np.float32)
        ks_row[0, off:off + kn] = ks
        off += kn

    wfc = np.zeros((KN_PAD, C_PAD), np.float32)
    wfc[:KN, :C] = np.asarray(params["fc_w"], np.float32).T
    bfc = np.zeros((1, C_PAD), np.float32)
    bfc[0, :C] = np.asarray(params["fc_b"], np.float32)

    return {
        "embed": jnp.asarray(params["embed"], jnp.float32),
        "conv_w": jnp.asarray(w_big, jnp.bfloat16),    # bf16 MXU operand
        "conv_b": jnp.asarray(b_conv, jnp.float32),
        "ks_row": jnp.asarray(ks_row, jnp.int32),
        "fc_w": jnp.asarray(wfc, jnp.float32),
        "fc_b": jnp.asarray(bfc, jnp.float32),
        "ks_max": ks_max,
        "num_classes": C,
    }


# ------------------------------ JAX wrapper -------------------------------- #
@functools.partial(jax.jit, static_argnames=("ks_max", "num_classes"))
def _forward(words, embed, conv_w, conv_b, ks_row, fc_w, fc_b,
             *, ks_max, num_classes):
    B, L = words.shape
    E = embed.shape[1]
    assert L >= ks_max, "sequence shorter than the largest conv kernel"
    KN_PAD = conv_w.shape[1]
    C_PAD = fc_w.shape[1]
    K_IN = conv_w.shape[0]
    assert K_IN == ks_max * E

    TB = _pick_batch_tile(B)
    B_pad = _round_up(B, TB)
    Lr = _round_up(L, _SUBLANE)        # conv/pool rows per sequence (>= L)
    Lx = Lr + ks_max - 1               # x rows needed per sequence for all taps

    # Embedding gather (f32 table), cast to bf16 for the MXU.
    # TODO(synk): move the gather in-kernel (scalar-prefetch `words` + HBM
    # table DMA) to save one HBM round-trip of the [B, L, E] activations; the
    # pad/im2col below could also be fused via allow_input_fusion.
    x = embed[words].astype(jnp.bfloat16)                          # [B, L, E]
    xp = jnp.pad(x, ((0, B_pad - B), (0, Lx - L), (0, 0)))         # [B_pad, Lx, E]
    # im2col: fold the ks_max taps into the contraction dim (per-sequence
    # windows, so cross-sequence contamination is structurally impossible).
    x_unf = jnp.concatenate([xp[:, k:k + Lr, :] for k in range(ks_max)],
                            axis=-1)                               # [B_pad, Lr, ks_max*E]

    # Last valid conv position per channel: t <= L - ks; padded channels < 0.
    thresh = (L - ks_row).astype(jnp.int32)                        # [1, KN_PAD]

    # TODO(synk): nn.Dropout(0.5) is stochastic in train mode; eval-mode
    # identity is used here (matches inference semantics).

    grid = (B_pad // TB,)

    def _const_spec(shape):
        # Constant index_map -> only ever DMA'd once; single-buffer it.
        return pl.BlockSpec(shape, lambda i: (0,) * len(shape),
                            pipeline_mode=pl.Buffered(1))

    out = pl.pallas_call(
        _cnn_forward_kernel,
        out_shape=jax.ShapeDtypeStruct((B_pad, C_PAD), jnp.float32),
        grid=grid,
        in_specs=[
            pl.BlockSpec((TB, Lr, K_IN), lambda i: (i, 0, 0)),     # activations
            _const_spec((1, KN_PAD)),                              # thresholds
            _const_spec((K_IN, KN_PAD)),                           # conv W
            _const_spec((1, KN_PAD)),                              # conv b
            _const_spec((KN_PAD, C_PAD)),                          # fc W
            _const_spec((1, C_PAD)),                               # fc b
        ],
        out_specs=pl.BlockSpec((TB, C_PAD), lambda i: (i, 0)),
        compiler_params=pltpu.CompilerParams(
            dimension_semantics=("parallel",),     # megacore split on v7x
            vmem_limit_bytes=32 * 1024 * 1024,     # safe within v7x's 64 MiB
        ),
    )(x_unf, thresh, conv_w, conv_b, fc_w, fc_b)

    return out[:B, :num_classes]


def cnn_model_forward(words, prepared):
    """Forward pass equivalent of CNN_model.forward (eval mode)."""
    logits = _forward(words, prepared["embed"], prepared["conv_w"],
                      prepared["conv_b"], prepared["ks_row"],
                      prepared["fc_w"], prepared["fc_b"],
                      ks_max=prepared["ks_max"],
                      num_classes=prepared["num_classes"])
    return {"pred": logits}


def _reference_forward(words, params, kernel_sizes=(3, 4, 5)):
    """Pure-JAX f32 reference (correctness sanity check)."""
    x = params["embed"][words]                            # [B, L, E]
    feats = []
    for w, b, ks in zip(params["conv_w"], params["conv_b"], kernel_sizes):
        L = x.shape[1]
        lout = L - ks + 1
        windows = jnp.stack([x[:, k:k + lout, :] for k in range(ks)], axis=-1)
        conv = jnp.einsum("btck,ock->bto", windows, w) + b[None, None, :]
        conv = jnp.maximum(conv, 0.0)
        feats.append(jnp.max(conv, axis=1))
    feat = jnp.concatenate(feats, axis=-1)
    return feat @ params["fc_w"].T + params["fc_b"]


if __name__ == "__main__":
    # Small shapes consistent with the module (grid has 2 steps over the batch).
    DICT_SIZE, EMBED_DIM, NUM_CLASSES = 50, 32, 5
    B, L = 16, 16

    key = jax.random.PRNGKey(0)
    k_params, k_words = jax.random.split(key)
    params = init_params(k_params, DICT_SIZE, EMBED_DIM, NUM_CLASSES)
    words = jax.random.randint(k_words, (B, L), 0, DICT_SIZE, dtype=jnp.int32)

    prepared = prepare_model(params)        # one-time packing, out of hot path
    out = cnn_model_forward(words, prepared)["pred"]
    out = jax.block_until_ready(out)

    ref = _reference_forward(words, params)
    assert out.shape == (B, NUM_CLASSES)
    # bf16 MXU operands -> looser tolerance vs the pure-f32 reference.
    assert jnp.allclose(out, ref, atol=5e-2, rtol=5e-2), (out, ref)

    print("KERNEL_OK")
</pallas_src>

<mosaic_0001>
module attributes {stable_mosaic.version = 11 : i64} {
  func.func @_cnn_forward_kernel(%arg0: i32, %arg1: memref<8x16x160xbf16, #tpu.memory_space<vmem>>, %arg2: memref<1x128xi32, #tpu.memory_space<vmem>>, %arg3: memref<160x128xbf16, #tpu.memory_space<vmem>>, %arg4: memref<1x128xf32, #tpu.memory_space<vmem>>, %arg5: memref<128x128xf32, #tpu.memory_space<vmem>>, %arg6: memref<1x128xf32, #tpu.memory_space<vmem>>, %arg7: memref<8x128xf32, #tpu.memory_space<vmem>>) attributes {dimension_semantics = [#tpu.dimension_semantics<parallel>], iteration_bounds = array<i64: 2>, scalar_prefetch = 0 : i64, scratch_operands = 0 : i64, tpu.core_type = #tpu.core_type<tc>, window_params = [{transform_indices = @transform_0, window_bounds = array<i64: 8, 16, 160>}, {pipeline_mode = #tpu.pipeline_mode<synchronous>, transform_indices = @transform_1, window_bounds = array<i64: 1, 128>}, {pipeline_mode = #tpu.pipeline_mode<synchronous>, transform_indices = @transform_2, window_bounds = array<i64: 160, 128>}, {pipeline_mode = #tpu.pipeline_mode<synchronous>, transform_indices = @transform_3, window_bounds = array<i64: 1, 128>}, {pipeline_mode = #tpu.pipeline_mode<synchronous>, transform_indices = @transform_4, window_bounds = array<i64: 128, 128>}, {pipeline_mode = #tpu.pipeline_mode<synchronous>, transform_indices = @transform_5, window_bounds = array<i64: 1, 128>}, {transform_indices = @transform_6, window_bounds = array<i64: 8, 128>}]} {
    %c0 = arith.constant 0 : index
    %c0_0 = arith.constant 0 : index
    %c0_1 = arith.constant 0 : index
    %0 = vector.load %arg1[%c0, %c0_0, %c0_1] : memref<8x16x160xbf16, #tpu.memory_space<vmem>>, vector<8x16x160xbf16>
    %1 = vector.shape_cast %0 : vector<8x16x160xbf16> to vector<128x160xbf16>
    %c0_2 = arith.constant 0 : index
    %c0_3 = arith.constant 0 : index
    %2 = vector.load %arg3[%c0_2, %c0_3] : memref<160x128xbf16, #tpu.memory_space<vmem>>, vector<160x128xbf16>
    %cst = arith.constant dense<0.000000e+00> : vector<128x128xf32>
    %3 = tpu.matmul %1, %2, %cst {dimension_numbers = #tpu.dot_dimension_numbers<[1], [0], [0], [1], [0, 0, 1, 1], [], []>} : vector<128x160xbf16>, vector<160x128xbf16>, vector<128x128xf32> -> vector<128x128xf32>
    %c0_4 = arith.constant 0 : index
    %c0_5 = arith.constant 0 : index
    %4 = vector.load %arg4[%c0_4, %c0_5] : memref<1x128xf32, #tpu.memory_space<vmem>>, vector<1x128xf32>
    %5 = vector.broadcast %4 : vector<1x128xf32> to vector<128x128xf32>
    %6 = arith.addf %3, %5 : vector<128x128xf32>
    %cst_6 = arith.constant 0.000000e+00 : f32
    %7 = vector.broadcast %cst_6 : f32 to vector<128x128xf32>
    %8 = arith.maximumf %6, %7 : vector<128x128xf32>
    %9 = vector.shape_cast %8 : vector<128x128xf32> to vector<8x16x128xf32>
    %10 = tpu.iota {dimensions = array<i32: 1>} : vector<8x16x128xi32>
    %c0_7 = arith.constant 0 : index
    %c0_8 = arith.constant 0 : index
    %11 = vector.load %arg2[%c0_7, %c0_8] : memref<1x128xi32, #tpu.memory_space<vmem>>, vector<1x128xi32>
    %12 = vector.shape_cast %11 : vector<1x128xi32> to vector<1x1x128xi32>
    %13 = vector.broadcast %12 : vector<1x1x128xi32> to vector<8x16x128xi32>
    %14 = arith.cmpi sle, %10, %13 : vector<8x16x128xi32>
    %cst_9 = arith.constant 0.000000e+00 : f32
    %15 = vector.broadcast %cst_9 : f32 to vector<8x16x128xf32>
    %16 = arith.select %14, %9, %15 : vector<8x16x128xi1>, vector<8x16x128xf32>
    %cst_10 = arith.constant dense<0xFF800000> : vector<8x128xf32>
    %17 = vector.multi_reduction <maximumf>, %16, %cst_10 [1] : vector<8x16x128xf32> to vector<8x128xf32>
    %c0_11 = arith.constant 0 : index
    %c0_12 = arith.constant 0 : index
    %18 = vector.load %arg5[%c0_11, %c0_12] : memref<128x128xf32, #tpu.memory_space<vmem>>, vector<128x128xf32>
    %cst_13 = arith.constant dense<0.000000e+00> : vector<8x128xf32>
    %19 = tpu.matmul %17, %18, %cst_13 {dimension_numbers = #tpu.dot_dimension_numbers<[1], [0], [0], [1], [0, 0, 1, 1], [], []>} : vector<8x128xf32>, vector<128x128xf32>, vector<8x128xf32> -> vector<8x128xf32>
    %c0_14 = arith.constant 0 : index
    %c0_15 = arith.constant 0 : index
    %20 = vector.load %arg6[%c0_14, %c0_15] : memref<1x128xf32, #tpu.memory_space<vmem>>, vector<1x128xf32>
    %21 = vector.broadcast %20 : vector<1x128xf32> to vector<8x128xf32>
    %22 = arith.addf %19, %21 : vector<8x128xf32>
    %c0_16 = arith.constant 0 : index
    %c0_17 = arith.constant 0 : index
    %23 = vector.load %arg7[%c0_16, %c0_17] : memref<8x128xf32, #tpu.memory_space<vmem>>, vector<8x128xf32>
    tpu.vector_store %arg7[%c0_16, %c0_17], %22 {strides = array<i32>} : memref<8x128xf32, #tpu.memory_space<vmem>>, vector<8x128xf32>,
    return
  }
  func.func @transform_0(%arg0: i32) -> (i32, i32, i32) {
    %c0_i32 = arith.constant 0 : i32
    %c0_i32_0 = arith.constant 0 : i32
    %c0_i32_1 = arith.constant 0 : i32
    return %arg0, %c0_i32, %c0_i32_0 : i32, i32, i32
  }
  func.func @transform_1(%arg0: i32) -> (i32, i32) {
    %c0_i32 = arith.constant 0 : i32
    %c0_i32_0 = arith.constant 0 : i32
    %c0_i32_1 = arith.constant 0 : i32
    return %c0_i32, %c0_i32_0 : i32, i32
  }
  func.func @transform_2(%arg0: i32) -> (i32, i32) {
    %c0_i32 = arith.constant 0 : i32
    %c0_i32_0 = arith.constant 0 : i32
    %c0_i32_1 = arith.constant 0 : i32
    return %c0_i32, %c0_i32_0 : i32, i32
  }
  func.func @transform_3(%arg0: i32) -> (i32, i32) {
    %c0_i32 = arith.constant 0 : i32
    %c0_i32_0 = arith.constant 0 : i32
    %c0_i32_1 = arith.constant 0 : i32
    return %c0_i32, %c0_i32_0 : i32, i32
  }
  func.func @transform_4(%arg0: i32) -> (i32, i32) {
    %c0_i32 = arith.constant 0 : i32
    %c0_i32_0 = arith.constant 0 : i32
    %c0_i32_1 = arith.constant 0 : i32
    return %c0_i32, %c0_i32_0 : i32, i32
  }
  func.func @transform_5(%arg0: i32) -> (i32, i32) {
    %c0_i32 = arith.constant 0 : i32
    %c0_i32_0 = arith.constant 0 : i32
    %c0_i32_1 = arith.constant 0 : i32
    return %c0_i32, %c0_i32_0 : i32, i32
  }
  func.func @transform_6(%arg0: i32) -> (i32, i32) {
    %c0_i32 = arith.constant 0 : i32
    %c0_i32_0 = arith.constant 0 : i32
    return %arg0, %c0_i32 : i32, i32
  }
}

</mosaic_0001>

<llo_original>
// kernel: _forward.1
$region0: #{_forward.1}
  #allocation0 [shape = 'u32[]', space=smem, size = 0x4, offset = 0x4, fixed_abs, tag = 'smem constant byte address 0x4 - core index']
  #allocation1 [shape = 'u32[144,128]{1,0:T(1,128)}', space=vmem, size = 0x12000, scoped, tag = 'internal scratch']
  %s0 = inlined_call_operand.vmem [shape: bf16[16,16,160], index: 0, kind: input, shape index: {}]
  %s1 = inlined_call_operand.vmem [shape: s32[1,128], index: 1, kind: input, shape index: {}]
  %s2 = inlined_call_operand.vmem [shape: bf16[160,128], index: 2, kind: input, shape index: {}]
  %s3 = inlined_call_operand.vmem [shape: f32[1,128], index: 3, kind: input, shape index: {}]
  %s4 = inlined_call_operand.vmem [shape: f32[128,128], index: 4, kind: input, shape index: {}]
  %s5 = inlined_call_operand.vmem [shape: f32[1,128], index: 5, kind: input, shape index: {}]
  %s6 = inlined_call_operand.vmem [shape: f32[16,128], index: 6, kind: output, shape index: {}]
  %s7 = sld [smem:[#allocation0]]
  $region57: #{_forward.1} parent=0
    _
  %s9 = ssub.s32 1, %s7
  %s10 = scalar_select 0, %s9, %s7
  loop: start=0, step=1, limit=4
  $region2: #{_forward.1} parent=0 // loop_pre_header
    _
  $region3: #{_forward.1} parent=0 // loop_header
    %s12 = sphi 0, %s16
    %p13 = scmp.ge.s32.totalorder %s12, 4
    %s22 = sphi 0, %s24
    %s25 = sphi 0, %s22
    %s26 = sphi 0, %s25
    %s42 = sphi 0, %s26
    %s46 = sphi 0, %s46
    %s48 = sphi 0, %s46
    %s49 = sphi 0, %s48
    %s63 = sphi 0, %s49
    %s67 = sphi 0, %s67
    %s69 = sphi 0, %s67
    %s70 = sphi 0, %s69
    %s84 = sphi 0, %s70
    %s88 = sphi 0, %s88
    %s90 = sphi 0, %s88
    %s91 = sphi 0, %s90
    %s105 = sphi 0, %s91
    %s109 = sphi 0, %s109
    %s111 = sphi 0, %s109
    %s112 = sphi 0, %s111
    %s126 = sphi 0, %s112
    %s130 = sphi 0, %s130
    %s132 = sphi 0, %s130
    %s133 = sphi 0, %s132
    %s147 = sphi 0, %s133
    %s153 = sphi 0, %s155
    %s156 = sphi 0, %s153
    %s157 = sphi 0, %s156
    %s173 = sphi 0, %s157
  $region4: #{_forward.1} parent=0 // loop_header_branch
    %15 = sbr.rel (%p13) target = $region8
  $region5: #{_forward.1} parent=0 // loop_body
    %s17 = ssub.s32 %s12, 1
    %s18 = ssub.s32 %s12, 2
    %s19 = sadd.s32 %s12, 1
    %s20 = ssub.s32 %s12, %s19
    %p21 = scmp.eq.s32.totalorder %s20, 0
    %s23 = sadd.s32 %s22, 1
    %s24 = scalar_select %p21, %s22, %s23
    %p27 = pneg %p21
    %p28 = scmp.eq.s32.totalorder %s12, 1
    %p29 = por %p27, %p28
    %p30 = scmp.ne.s32.totalorder %s22, %s25
    %p31 = scmp.eq.s32.totalorder %s12, 0
    %p32 = por %p30, %p31
    %p33 = scmp.ne.s32.totalorder %s22, %s25
    %p34 = scmp.eq.s32.totalorder %s17, 1
    %p35 = por %p33, %p34
    %p36 = scmp.ne.s32.totalorder %s25, %s26
    %p37 = scmp.eq.s32.totalorder %s17, 0
    %p38 = por %p36, %p37
    %p39 = scmp.ne.s32.totalorder %s25, %s26
    %p40 = scmp.eq.s32.totalorder %s18, 1
    %p41 = por %p39, %p40
    %p43 = scmp.ne.s32.totalorder %s26, %s42
    %p44 = scmp.eq.s32.totalorder %s18, 0
    %p45 = por %p43, %p44
    %s47 = sadd.s32 %s46, 1
    %p50 = scmp.eq.s32.totalorder %s12, 1
    %p51 = scmp.ne.s32.totalorder %s46, %s48
    %p52 = scmp.eq.s32.totalorder %s12, 0
    %p53 = por %p51, %p52
    %p54 = scmp.ne.s32.totalorder %s46, %s48
    %p55 = scmp.eq.s32.totalorder %s17, 1
    %p56 = por %p54, %p55
    %p57 = scmp.ne.s32.totalorder %s48, %s49
    %p58 = scmp.eq.s32.totalorder %s17, 0
    %p59 = por %p57, %p58
    %p60 = scmp.ne.s32.totalorder %s48, %s49
    %p61 = scmp.eq.s32.totalorder %s18, 1
    %p62 = por %p60, %p61
    %p64 = scmp.ne.s32.totalorder %s49, %s63
    %p65 = scmp.eq.s32.totalorder %s18, 0
    %p66 = por %p64, %p65
    %s68 = sadd.s32 %s67, 1
    %p71 = scmp.eq.s32.totalorder %s12, 1
    %p72 = scmp.ne.s32.totalorder %s67, %s69
    %p73 = scmp.eq.s32.totalorder %s12, 0
    %p74 = por %p72, %p73
    %p75 = scmp.ne.s32.totalorder %s67, %s69
    %p76 = scmp.eq.s32.totalorder %s17, 1
    %p77 = por %p75, %p76
    %p78 = scmp.ne.s32.totalorder %s69, %s70
    %p79 = scmp.eq.s32.totalorder %s17, 0
    %p80 = por %p78, %p79
    %p81 = scmp.ne.s32.totalorder %s69, %s70
    %p82 = scmp.eq.s32.totalorder %s18, 1
    %p83 = por %p81, %p82
    %p85 = scmp.ne.s32.totalorder %s70, %s84
    %p86 = scmp.eq.s32.totalorder %s18, 0
    %p87 = por %p85, %p86
    %s89 = sadd.s32 %s88, 1
    %p92 = scmp.eq.s32.totalorder %s12, 1
    %p93 = scmp.ne.s32.totalorder %s88, %s90
    %p94 = scmp.eq.s32.totalorder %s12, 0
    %p95 = por %p93, %p94
    %p96 = scmp.ne.s32.totalorder %s88, %s90
    %p97 = scmp.eq.s32.totalorder %s17, 1
    %p98 = por %p96, %p97
    %p99 = scmp.ne.s32.totalorder %s90, %s91
    %p100 = scmp.eq.s32.totalorder %s17, 0
    %p101 = por %p99, %p100
    %p102 = scmp.ne.s32.totalorder %s90, %s91
    %p103 = scmp.eq.s32.totalorder %s18, 1
    %p104 = por %p102, %p103
    %p106 = scmp.ne.s32.totalorder %s91, %s105
    %p107 = scmp.eq.s32.totalorder %s18, 0
    %p108 = por %p106, %p107
    %s110 = sadd.s32 %s109, 1
    %p113 = scmp.eq.s32.totalorder %s12, 1
    %p114 = scmp.ne.s32.totalorder %s109, %s111
    %p115 = scmp.eq.s32.totalorder %s12, 0
    %p116 = por %p114, %p115
    %p117 = scmp.ne.s32.totalorder %s109, %s111
    %p118 = scmp.eq.s32.totalorder %s17, 1
    %p119 = por %p117, %p118
    %p120 = scmp.ne.s32.totalorder %s111, %s112
    %p121 = scmp.eq.s32.totalorder %s17, 0
    %p122 = por %p120, %p121
    %p123 = scmp.ne.s32.totalorder %s111, %s112
    %p124 = scmp.eq.s32.totalorder %s18, 1
    %p125 = por %p123, %p124
    %p127 = scmp.ne.s32.totalorder %s112, %s126
    %p128 = scmp.eq.s32.totalorder %s18, 0
    %p129 = por %p127, %p128
    %s131 = sadd.s32 %s130, 1
    %p134 = scmp.eq.s32.totalorder %s12, 1
    %p135 = scmp.ne.s32.totalorder %s130, %s132
    %p136 = scmp.eq.s32.totalorder %s12, 0
    %p137 = por %p135, %p136
    %p138 = scmp.ne.s32.totalorder %s130, %s132
    %p139 = scmp.eq.s32.totalorder %s17, 1
    %p140 = por %p138, %p139
    %p141 = scmp.ne.s32.totalorder %s132, %s133
    %p142 = scmp.eq.s32.totalorder %s17, 0
    %p143 = por %p141, %p142
    %p144 = scmp.ne.s32.totalorder %s132, %s133
    %p145 = scmp.eq.s32.totalorder %s18, 1
    %p146 = por %p144, %p145
    %p148 = scmp.ne.s32.totalorder %s133, %s147
    %p149 = scmp.eq.s32.totalorder %s18, 0
    %p150 = por %p148, %p149
    %s151 = ssub.s32 %s12, %s19
    %p152 = scmp.eq.s32.totalorder %s151, 0
    %s154 = sadd.s32 %s153, 1
    %s155 = scalar_select %p152, %s153, %s154
    %p158 = pneg %p152
    %p159 = scmp.eq.s32.totalorder %s12, 1
    %p160 = por %p158, %p159
    %p161 = scmp.ne.s32.totalorder %s153, %s156
    %p162 = scmp.eq.s32.totalorder %s12, 0
    %p163 = por %p161, %p162
    %p164 = scmp.ne.s32.totalorder %s153, %s156
    %p165 = scmp.eq.s32.totalorder %s17, 1
    %p166 = por %p164, %p165
    %p167 = scmp.ne.s32.totalorder %s156, %s157
    %p168 = scmp.eq.s32.totalorder %s17, 0
    %p169 = por %p167, %p168
    %p170 = scmp.ne.s32.totalorder %s156, %s157
    %p171 = scmp.eq.s32.totalorder %s18, 1
    %p172 = por %p170, %p171
    %p174 = scmp.ne.s32.totalorder %s157, %s173
    %p175 = scmp.eq.s32.totalorder %s18, 0
    %p176 = por %p174, %p175
    %p177 = scmp.le.s32.totalorder 1, %s12
    %p178 = scmp.lt.s32.totalorder %s12, 3
    %p179 = pnand %p177, %p178
    %p180 = pneg %p179
    // Predicated region
    $region9: #{_forward.1} parent=5 // pred_check
      _
    $region10: #{_forward.1} parent=5 // pred_check_branch
      %182 = sbr.rel (%p179) target = $region12
    $region11: #{_forward.1} parent=5 // pred_region
      %s183 = ssub.s32 %s12, 1
      // Predicated region
      $region13: #{_forward.1} parent=11 // pred_check
        %p184 = pneg %p59
      $region14: #{_forward.1} parent=11 // pred_check_branch
        %186 = sbr.rel (%p184) target = $region16
      $region15: #{_forward.1} parent=11 // pred_region
        _
      $region16: #{_forward.1} parent=11 // pred_fallthru
        _
      // Predicated region
      $region17: #{_forward.1} parent=11 // pred_check
        %p187 = pneg %p80
      $region18: #{_forward.1} parent=11 // pred_check_branch
        %189 = sbr.rel (%p187) target = $region20
      $region19: #{_forward.1} parent=11 // pred_region
        _
      $region20: #{_forward.1} parent=11 // pred_fallthru
        _
      // Predicated region
      $region21: #{_forward.1} parent=11 // pred_check
        %p190 = pneg %p101
      $region22: #{_forward.1} parent=11 // pred_check_branch
        %192 = sbr.rel (%p190) target = $region24
      $region23: #{_forward.1} parent=11 // pred_region
        _
      $region24: #{_forward.1} parent=11 // pred_fallthru
        _
      // Predicated region
      $region25: #{_forward.1} parent=11 // pred_check
        %p193 = pneg %p122
      $region26: #{_forward.1} parent=11 // pred_check_branch
        %195 = sbr.rel (%p193) target = $region28
      $region27: #{_forward.1} parent=11 // pred_region
        _
      $region28: #{_forward.1} parent=11 // pred_fallthru
        _
      // Predicated region
      $region29: #{_forward.1} parent=11 // pred_check
        %p196 = pneg %p143
      $region30: #{_forward.1} parent=11 // pred_check_branch
        %198 = sbr.rel (%p196) target = $region32
      $region31: #{_forward.1} parent=11 // pred_region
        _
      $region32: #{_forward.1} parent=11 // pred_fallthru
        _
    $region12: #{_forward.1} parent=5 // pred_fallthru
      _
    %p199 = scmp.lt.s32.totalorder %s12, 2
    // Predicated region
    $region33: #{_forward.1} parent=5 // pred_check
      %p200 = pneg %p199
    $region34: #{_forward.1} parent=5 // pred_check_branch
      %202 = sbr.rel (%p200) target = $region36
    $region35: #{_forward.1} parent=5 // pred_region
      // Predicated region
      $region37: #{_forward.1} parent=35 // pred_check
        %p203 = pneg %p32
      $region38: #{_forward.1} parent=35 // pred_check_branch
        %205 = sbr.rel (%p203) target = $region40
      $region39: #{_forward.1} parent=35 // pred_region
        %s206 = smul.u32 8, %s12
        %p207 = scmp.lt.s32.totalorder %s206, 15
        %s208 = scalar_select %p207, %s206, 15
        %s209 = smul.addr %s208, 4
        %s210 = smul.addr %s209, 4
        %s211 = scalar_lea.vmem %s0, %s210
        %s212 = smul.u32 8, %s12
      $region40: #{_forward.1} parent=35 // pred_fallthru
        _
    $region36: #{_forward.1} parent=5 // pred_fallthru
      _
    %p213 = scmp.le.s32.totalorder 1, %s12
    %p214 = scmp.lt.s32.totalorder %s12, 3
    %p215 = pnand %p213, %p214
    %p216 = pneg %p215
    // Predicated region
    $region41: #{_forward.1} parent=5 // pred_check
      _
    $region42: #{_forward.1} parent=5 // pred_check_branch
      %218 = sbr.rel (%p215) target = $region44
    $region43: #{_forward.1} parent=5 // pred_region
      %s219 = ssub.s32 %s12, 1
      %s220 = smul.u32 8, %s17
      %p221 = scmp.lt.s32.totalorder %s220, 15
      %s222 = scalar_select %p221, %s220, 15
      %s223 = smul.addr %s222, 4
      %s224 = smul.addr %s223, 4
      %s225 = scalar_lea.vmem %s0, %s224
      %p226 = pneg %p38
      %p227 = pneg %p35
      %p228 = pneg %p59
      %p229 = pneg %p56
      %p230 = pneg %p80
      %p231 = pneg %p77
      %p232 = pneg %p101
      %p233 = pneg %p98
      %p234 = pneg %p122
      %p235 = pneg %p119
      %p236 = pneg %p143
      %p237 = pneg %p140
      %p238 = pneg %p169
      %p239 = pneg %p166
      %p240 = scmp.lt.s32.totalorder %s17, 1
      %s241 = scalar_select %p240, %s17, 1
      %s242 = smul.addr %s241, 8
      %s243 = scalar_lea.vmem %s6, %s242
      %s244 = smul.u32 8, %s17
      %p245 = scmp.lt.s32.totalorder %s244, 15
      %s246 = scalar_select %p245, %s244, 15
      %s247 = smul.addr %s246, 4
      %s248 = smul.addr %s247, 4
      %s249 = scalar_lea.vmem %s0, %s248
      %s250 = smul.u32 8, %s17
      %p251 = scmp.lt.s32.totalorder %s17, 1
      %s252 = scalar_select %p251, %s17, 1
      %s253 = smul.addr %s252, 8
      %s254 = scalar_lea.vmem %s6, %s253
      %v256 = vld [vmem:[%s249] sm:$0xff]
      %v257 = vld [vmem:[%s249 + $0x8] sm:$0xff]
      %v258 = vld [vmem:[%s249 + $0x10] sm:$0xff]
      %v259 = vld [vmem:[%s249 + $0x18] sm:$0xff]
      %v260 = vld [vmem:[%s249 + $0x20] sm:$0xff]
      %v261 = vld [vmem:[%s249 + $0x28] sm:$0xff]
      %v262 = vld [vmem:[%s249 + $0x30] sm:$0xff]
      %v263 = vld [vmem:[%s249 + $0x38] sm:$0xff]
      %v264 = vld [vmem:[%s249 + $0x40] sm:$0xff]
      %v265 = vld [vmem:[%s249 + $0x48] sm:$0xff]
      %v266 = vld [vmem:[%s249 + $0x50] sm:$0xff]
      %v267 = vld [vmem:[%s249 + $0x58] sm:$0xff]
      %v268 = vld [vmem:[%s249 + $0x60] sm:$0xff]
      %v269 = vld [vmem:[%s249 + $0x68] sm:$0xff]
      %v270 = vld [vmem:[%s249 + $0x70] sm:$0xff]
      %v271 = vld [vmem:[%s249 + $0x78] sm:$0xff]
      %v272 = vld [vmem:[%s2] sm:$0xf]
      %v273 = vld [vmem:[%s2 + $0x4] sm:$0xf]
      %v274 = vld [vmem:[%s2 + $0x8] sm:$0xf]
      %v275 = vld [vmem:[%s2 + $0xc] sm:$0xf]
      %v276 = vld [vmem:[%s2 + $0x10] sm:$0xf]
      %v277 = vld [vmem:[%s2 + $0x14] sm:$0xf]
      %v278 = vld [vmem:[%s2 + $0x18] sm:$0xf]
      %v279 = vld [vmem:[%s2 + $0x1c] sm:$0xf]
      %v280 = vld [vmem:[%s2 + $0x20] sm:$0xf]
      %v281 = vld [vmem:[%s2 + $0x24] sm:$0xf]
      %v282 = vld [vmem:[%s2 + $0x28] sm:$0xf]
      %v283 = vld [vmem:[%s2 + $0x2c] sm:$0xf]
      %v284 = vld [vmem:[%s2 + $0x30] sm:$0xf]
      %v285 = vld [vmem:[%s2 + $0x34] sm:$0xf]
      %v286 = vld [vmem:[%s2 + $0x38] sm:$0xf]
      %v287 = vld [vmem:[%s2 + $0x3c] sm:$0xf]
      %v288 = vld [vmem:[%s2 + $0x40] sm:$0xf]
      %v289 = vld [vmem:[%s2 + $0x44] sm:$0xf]
      %v290 = vld [vmem:[%s2 + $0x48] sm:$0xf]
      %v291 = vld [vmem:[%s2 + $0x4c] sm:$0xf]
      %v292 = vld [vmem:[%s3] sm:$0x1]
      %v294 = vlaneseq
      %v295 = vshrl.u32 %v294, 7
      %v296 = vsub.s32 0, %v295
      %v297 = vrot.slane %v292, %v296
      %v315 = vunpack.c.l.b16 %v256
      %v316 = vunpack.c.h.b16 %v256
      %v317 = vunpack.c.l.b16 %v257
      %v318 = vunpack.c.h.b16 %v257
      %v319 = vunpack.c.l.b16 %v258
      %v320 = vunpack.c.h.b16 %v258
      %v321 = vunpack.c.l.b16 %v259
      %v322 = vunpack.c.h.b16 %v259
      %v323 = vunpack.c.l.b16 %v260
      %v324 = vunpack.c.h.b16 %v260
      %v325 = vunpack.c.l.b16 %v261
      %v326 = vunpack.c.h.b16 %v261
      %v327 = vunpack.c.l.b16 %v262
      %v328 = vunpack.c.h.b16 %v262
      %v329 = vunpack.c.l.b16 %v263
      %v330 = vunpack.c.h.b16 %v263
      %v331 = vunpack.c.l.b16 %v264
      %v332 = vunpack.c.h.b16 %v264
      %v333 = vunpack.c.l.b16 %v265
      %v334 = vunpack.c.h.b16 %v265
      %v335 = vunpack.c.l.b16 %v266
      %v336 = vunpack.c.h.b16 %v266
      %v337 = vunpack.c.l.b16 %v267
      %v338 = vunpack.c.h.b16 %v267
      %v339 = vunpack.c.l.b16 %v268
      %v340 = vunpack.c.h.b16 %v268
      %v341 = vunpack.c.l.b16 %v269
      %v342 = vunpack.c.h.b16 %v269
      %v343 = vunpack.c.l.b16 %v270
      %v344 = vunpack.c.h.b16 %v270
      %v345 = vunpack.c.l.b16 %v271
      %v346 = vunpack.c.h.b16 %v271
      %v347 = vpack.c.b16 %v317, %v315
      %v348 = vpack.c.b16 %v318, %v316
      %v349 = vpack.c.b16 %v321, %v319
      %v350 = vpack.c.b16 %v322, %v320
      %v351 = vpack.c.b16 %v325, %v323
      %v352 = vpack.c.b16 %v326, %v324
      %v353 = vpack.c.b16 %v329, %v327
      %v354 = vpack.c.b16 %v330, %v328
      %v355 = vpack.c.b16 %v333, %v331
      %v356 = vpack.c.b16 %v334, %v332
      %v357 = vpack.c.b16 %v337, %v335
      %v358 = vpack.c.b16 %v338, %v336
      %v359 = vpack.c.b16 %v341, %v339
      %v360 = vpack.c.b16 %v342, %v340
      %v361 = vpack.c.b16 %v345, %v343
      %v362 = vpack.c.b16 %v346, %v344
      %v391 = vunpack.c.l.b16 %v272
      %v392 = vunpack.c.l.b16 %v273
      %v393 = vunpack.c.l.b16 %v274
      %v394 = vunpack.c.l.b16 %v275
      %v395 = vunpack.c.l.b16 %v276
      %v396 = vunpack.c.l.b16 %v277
      %v397 = vunpack.c.l.b16 %v278
      %v398 = vunpack.c.l.b16 %v279
      %v399 = vunpack.c.l.b16 %v280
      %v400 = vunpack.c.l.b16 %v281
      %v401 = vunpack.c.l.b16 %v282
      %v402 = vunpack.c.l.b16 %v283
      %v403 = vunpack.c.l.b16 %v284
      %v404 = vunpack.c.l.b16 %v285
      %v405 = vunpack.c.l.b16 %v286
      %v406 = vunpack.c.l.b16 %v287
      %v407 = vunpack.c.l.b16 %v288
      %v408 = vunpack.c.l.b16 %v289
      %v409 = vunpack.c.l.b16 %v290
      %v410 = vunpack.c.l.b16 %v291
      %v411 = vpack.c.b16 %v392, %v391
      %v412 = vpack.c.b16 %v394, %v393
      %v413 = vpack.c.b16 %v396, %v395
      %v414 = vpack.c.b16 %v398, %v397
      %v415 = vpack.c.b16 %v400, %v399
      %v416 = vpack.c.b16 %v402, %v401
      %v417 = vpack.c.b16 %v404, %v403
      %v418 = vpack.c.b16 %v406, %v405
      %v419 = vpack.c.b16 %v408, %v407
      %v420 = vpack.c.b16 %v410, %v409
      %vm431 = vcmask 261120
      %v433 = vsel %vm431, %v348, 0
      %v436 = vsel %vm431, %v350, 0
      %v439 = vsel %vm431, %v352, 0
      %v442 = vsel %vm431, %v354, 0
      %v445 = vsel %vm431, %v356, 0
      %v448 = vsel %vm431, %v358, 0
      %v451 = vsel %vm431, %v360, 0
      %v454 = vsel %vm431, %v362, 0
      %456 = vmatprep.subr.bf16.mxu0 0
      %457 = vmatpush1.bf16.msra.mxu0 %v411
      %458 = vmatprep.subr.bf16.mxu0 0
      %459 = vmatpush1.bf16.msra.mxu0 %v412
      %460 = vmatprep.subr.bf16.mxu0 0
      %461 = vmatpush1.bf16.msra.mxu0 %v413
      %462 = vmatprep.subr.bf16.mxu0 0
      %463 = vmatpush1.bf16.msra.mxu0 %v414
      %464 = vmatprep.subr.bf16.mxu0 0
      %465 = vmatpush1.bf16.msra.mxu0 %v415
      %466 = vmatprep.subr.bf16.mxu0 0
      %467 = vmatpush1.bf16.msra.mxu0 %v416
      %468 = vmatprep.subr.bf16.mxu0 0
      %469 = vmatpush1.bf16.msra.mxu0 %v417
      %470 = vmatprep.subr.bf16.mxu0 0
      %471 = vmatpush1.bf16.msra.mxu0 %v418
      %472 = vmatprep.subr.bf16.mxu0 0
      %473 = vmatpush1.bf16.msra.mxu0 %v419
      %474 = vmatprep.subr.bf16.mxu0 0
      %475 = vmatpush1.bf16.msra.mxu0 %v420
      %476 = vmatprep.subr.bf16.mxu0 0
      %477 = vmatpush1.bf16.msra.mxu0 0
      %478 = vmatprep.subr.bf16.mxu0 0
      %479 = vmatpush1.bf16.msra.mxu0 0
      %480 = vmatprep.subr.bf16.mxu0 0
      %481 = vmatpush1.bf16.msra.mxu0 0
      %482 = vmatprep.subr.bf16.mxu0 0
      %483 = vmatpush1.bf16.msra.mxu0 0
      %484 = vmatprep.subr.bf16.mxu0 0
      %485 = vmatpush1.bf16.msra.mxu0 0
      %486 = vmatprep.subr.bf16.mxu0 0
      %487 = vmatpush1.bf16.msra.mxu0 0
      %488 = vmatprep.mubr.bf16.mxu0 %v433
      %489 = vmatmul.mubr.bf16.gmra.mrb[0].mxu0 %v347
      %v490 = vpop.f32.mrb[0].mxu0
      %v491 = vadd.f32 %v297, %v490
      %v492 = vpop.f32.mrb[0].mxu0
      %v493 = vpop.f32.mrb[0].mxu0
      %v494 = vadd.f32 %v297, %v493
      %v495 = vpop.f32.mrb[0].mxu0
      %496 = vmatprep.mubr.bf16.mxu0 %v436
      %497 = vmatmul.mubr.bf16.gmra.mrb[0].mxu0 %v349
      %v498 = vpop.f32.mrb[0].mxu0
      %v499 = vadd.f32 %v297, %v498
      %v500 = vpop.f32.mrb[0].mxu0
      %v501 = vpop.f32.mrb[0].mxu0
      %v502 = vadd.f32 %v297, %v501
      %v503 = vpop.f32.mrb[0].mxu0
      %504 = vmatprep.mubr.bf16.mxu0 %v439
      %505 = vmatmul.mubr.bf16.gmra.mrb[0].mxu0 %v351
      %v506 = vpop.f32.mrb[0].mxu0
      %v507 = vadd.f32 %v297, %v506
      %v508 = vpop.f32.mrb[0].mxu0
      %v509 = vpop.f32.mrb[0].mxu0
      %v510 = vadd.f32 %v297, %v509
      %v511 = vpop.f32.mrb[0].mxu0
      %512 = vmatprep.mubr.bf16.mxu0 %v442
      %513 = vmatmul.mubr.bf16.gmra.mrb[0].mxu0 %v353
      %v514 = vpop.f32.mrb[0].mxu0
      %v515 = vadd.f32 %v297, %v514
      %v516 = vpop.f32.mrb[0].mxu0
      %v517 = vpop.f32.mrb[0].mxu0
      %v518 = vadd.f32 %v297, %v517
      %v519 = vpop.f32.mrb[0].mxu0
      %520 = vmatprep.mubr.bf16.mxu0 %v445
      %521 = vmatmul.mubr.bf16.gmra.mrb[0].mxu0 %v355
      %v522 = vpop.f32.mrb[0].mxu0
      %v523 = vadd.f32 %v297, %v522
      %v524 = vpop.f32.mrb[0].mxu0
      %v525 = vpop.f32.mrb[0].mxu0
      %v526 = vadd.f32 %v297, %v525
      %v527 = vpop.f32.mrb[0].mxu0
      %528 = vmatprep.mubr.bf16.mxu0 %v448
      %529 = vmatmul.mubr.bf16.gmra.mrb[0].mxu0 %v357
      %v530 = vpop.f32.mrb[0].mxu0
      %v531 = vadd.f32 %v297, %v530
      %v532 = vpop.f32.mrb[0].mxu0
      %v533 = vpop.f32.mrb[0].mxu0
      %v534 = vadd.f32 %v297, %v533
      %v535 = vpop.f32.mrb[0].mxu0
      %536 = vmatprep.mubr.bf16.mxu0 %v451
      %537 = vmatmul.mubr.bf16.gmra.mrb[0].mxu0 %v359
      %v538 = vpop.f32.mrb[0].mxu0
      %v539 = vadd.f32 %v297, %v538
      %v540 = vpop.f32.mrb[0].mxu0
      %v541 = vpop.f32.mrb[0].mxu0
      %v542 = vadd.f32 %v297, %v541
      %v543 = vpop.f32.mrb[0].mxu0
      %544 = vmatprep.mubr.bf16.mxu0 %v454
      %545 = vmatmul.mubr.bf16.gmra.mrb[0].mxu0 %v361
      %v546 = vpop.f32.mrb[0].mxu0
      %v547 = vadd.f32 %v297, %v546
      %v548 = vpop.f32.mrb[0].mxu0
      %v549 = vpop.f32.mrb[0].mxu0
      %v550 = vadd.f32 %v297, %v549
      %v551 = vpop.f32.mrb[0].mxu0
      %552 = vdwg.mxu0
      %v553 = vmax.f32 %v491, 0.0
      %v554 = vmax.f32 %v494, 0.0
      %v555 = vmax.f32 %v499, 0.0
      %v556 = vmax.f32 %v502, 0.0
      %v557 = vmax.f32 %v507, 0.0
      %v558 = vmax.f32 %v510, 0.0
      %v559 = vmax.f32 %v515, 0.0
      %v560 = vmax.f32 %v518, 0.0
      %v561 = vmax.f32 %v523, 0.0
      %v562 = vmax.f32 %v526, 0.0
      %v563 = vmax.f32 %v531, 0.0
      %v564 = vmax.f32 %v534, 0.0
      %v565 = vmax.f32 %v539, 0.0
      %v566 = vmax.f32 %v542, 0.0
      %v567 = vmax.f32 %v547, 0.0
      %v568 = vmax.f32 %v550, 0.0
      %v569 = vlaneseq
      %v570 = vshrl.u32 %v569, 7
      %v571 = vadd.s32 %v570, 8
      %v572 = vld [vmem:[%s1] sm:$0x1]
      %v573 = vlaneseq
      %v574 = vshrl.u32 %v573, 7
      %v575 = vsub.s32 0, %v574
      %v576 = vrot.slane %v572, %v575
      %vm577 = vcmp.le.s32.totalorder %v570, %v576
      %vm578 = vcmp.le.s32.totalorder %v571, %v576
      %v579 = vsel %vm577, %v553, 0.0
      %v580 = vsel %vm578, %v554, 0.0
      %v581 = vsel %vm577, %v555, 0.0
      %v582 = vsel %vm578, %v556, 0.0
      %v583 = vsel %vm577, %v557, 0.0
      %v584 = vsel %vm578, %v558, 0.0
      %v585 = vsel %vm577, %v559, 0.0
      %v586 = vsel %vm578, %v560, 0.0
      %v587 = vsel %vm577, %v561, 0.0
      %v588 = vsel %vm578, %v562, 0.0
      %v589 = vsel %vm577, %v563, 0.0
      %v590 = vsel %vm578, %v564, 0.0
      %v591 = vsel %vm577, %v565, 0.0
      %v592 = vsel %vm578, %v566, 0.0
      %v593 = vsel %vm577, %v567, 0.0
      %v594 = vsel %vm578, %v568, 0.0
      %v595 = vmax.f32 %v579, %v580
      %v596 = vrot.slane %v595, 4
      %v597 = vmax.f32 %v595, %v596
      %v598 = vrot.slane %v597, 2
      %v599 = vmax.f32 %v597, %v598
      %v600 = vrot.slane %v599, 1
      %v601 = vmax.f32 %v599, %v600
      %v602 = vmax.f32 %v581, %v582
      %v603 = vrot.slane %v602, 4
      %v604 = vmax.f32 %v602, %v603
      %v605 = vrot.slane %v604, 2
      %v606 = vmax.f32 %v604, %v605
      %v607 = vrot.slane %v606, 1
      %v608 = vmax.f32 %v606, %v607
      %v609 = vmax.f32 %v583, %v584
      %v610 = vrot.slane %v609, 4
      %v611 = vmax.f32 %v609, %v610
      %v612 = vrot.slane %v611, 2
      %v613 = vmax.f32 %v611, %v612
      %v614 = vrot.slane %v613, 1
      %v615 = vmax.f32 %v613, %v614
      %v616 = vmax.f32 %v585, %v586
      %v617 = vrot.slane %v616, 4
      %v618 = vmax.f32 %v616, %v617
      %v619 = vrot.slane %v618, 2
      %v620 = vmax.f32 %v618, %v619
      %v621 = vrot.slane %v620, 1
      %v622 = vmax.f32 %v620, %v621
      %v623 = vmax.f32 %v587, %v588
      %v624 = vrot.slane %v623, 4
      %v625 = vmax.f32 %v623, %v624
      %v626 = vrot.slane %v625, 2
      %v627 = vmax.f32 %v625, %v626
      %v628 = vrot.slane %v627, 1
      %v629 = vmax.f32 %v627, %v628
      %v630 = vmax.f32 %v589, %v590
      %v631 = vrot.slane %v630, 4
      %v632 = vmax.f32 %v630, %v631
      %v633 = vrot.slane %v632, 2
      %v634 = vmax.f32 %v632, %v633
      %v635 = vrot.slane %v634, 1
      %v636 = vmax.f32 %v634, %v635
      %v637 = vmax.f32 %v591, %v592
      %v638 = vrot.slane %v637, 4
      %v639 = vmax.f32 %v637, %v638
      %v640 = vrot.slane %v639, 2
      %v641 = vmax.f32 %v639, %v640
      %v642 = vrot.slane %v641, 1
      %v643 = vmax.f32 %v641, %v642
      %v644 = vmax.f32 %v593, %v594
      %v645 = vrot.slane %v644, 4
      %v646 = vmax.f32 %v644, %v645
      %v647 = vrot.slane %v646, 2
      %v648 = vmax.f32 %v646, %v647
      %v649 = vrot.slane %v648, 1
      %v650 = vmax.f32 %v648, %v649
      %v651 = vld [vmem:[%s4] sm:$0xff]
      %v652 = vld [vmem:[%s4 + $0x8] sm:$0xff]
      %v653 = vld [vmem:[%s4 + $0x10] sm:$0xff]
      %v654 = vld [vmem:[%s4 + $0x18] sm:$0xff]
      %v655 = vld [vmem:[%s4 + $0x20] sm:$0xff]
      %v656 = vld [vmem:[%s4 + $0x28] sm:$0xff]
      %v657 = vld [vmem:[%s4 + $0x30] sm:$0xff]
      %v658 = vld [vmem:[%s4 + $0x38] sm:$0xff]
      %v659 = vld [vmem:[%s4 + $0x40] sm:$0xff]
      %v660 = vld [vmem:[%s4 + $0x48] sm:$0xff]
      %v661 = vld [vmem:[%s4 + $0x50] sm:$0xff]
      %v662 = vld [vmem:[%s4 + $0x58] sm:$0xff]
      %v663 = vld [vmem:[%s4 + $0x60] sm:$0xff]
      %v664 = vld [vmem:[%s4 + $0x68] sm:$0xff]
      %v665 = vld [vmem:[%s4 + $0x70] sm:$0xff]
      %v666 = vld [vmem:[%s4 + $0x78] sm:$0xff]
      %v667 = vld [vmem:[%s5] sm:$0x1]
      %v669 = vlaneseq
      %v670 = vshrl.u32 %v669, 7
      %v671 = vsub.s32 0, %v670
      %v672 = vrot.slane %v667, %v671
      %vm682 = vcmask 1041409
      %v683 = vsel %vm682, %v608, %v601
      %vm684 = vcmask 1042434
      %v685 = vsel %vm684, %v615, %v683
      %vm686 = vcmask 1043459
      %v687 = vsel %vm686, %v622, %v685
      %vm688 = vcmask 1044484
      %v689 = vsel %vm688, %v629, %v687
      %vm690 = vcmask 1045509
      %v691 = vsel %vm690, %v636, %v689
      %vm692 = vcmask 1046534
      %v693 = vsel %vm692, %v643, %v691
      %vm694 = vcmask 1047559
      %v695 = vsel %vm694, %v650, %v693
      %697 = vmatprep.subr.mxu0 0.0
      %698 = vmatpush1.msra.mxu0 %v651
      %699 = vmatprep.subr.mxu0 0.0
      %700 = vmatpush1.msra.mxu0 %v652
      %701 = vmatprep.subr.mxu0 0.0
      %702 = vmatpush1.msra.mxu0 %v653
      %703 = vmatprep.subr.mxu0 0.0
      %704 = vmatpush1.msra.mxu0 %v654
      %705 = vmatprep.subr.mxu0 0.0
      %706 = vmatpush1.msra.mxu0 %v655
      %707 = vmatprep.subr.mxu0 0.0
      %708 = vmatpush1.msra.mxu0 %v656
      %709 = vmatprep.subr.mxu0 0.0
      %710 = vmatpush1.msra.mxu0 %v657
      %711 = vmatprep.subr.mxu0 0.0
      %712 = vmatpush1.msra.mxu0 %v658
      %713 = vmatprep.subr.mxu0 0.0
      %714 = vmatpush1.msra.mxu0 %v659
      %715 = vmatprep.subr.mxu0 0.0
      %716 = vmatpush1.msra.mxu0 %v660
      %717 = vmatprep.subr.mxu0 0.0
      %718 = vmatpush1.msra.mxu0 %v661
      %719 = vmatprep.subr.mxu0 0.0
      %720 = vmatpush1.msra.mxu0 %v662
      %721 = vmatprep.subr.mxu0 0.0
      %722 = vmatpush1.msra.mxu0 %v663
      %723 = vmatprep.subr.mxu0 0.0
      %724 = vmatpush1.msra.mxu0 %v664
      %725 = vmatprep.subr.mxu0 0.0
      %726 = vmatpush1.msra.mxu0 %v665
      %727 = vmatprep.subr.mxu0 0.0
      %728 = vmatpush1.msra.mxu0 %v666
      %729 = vmatprep.subr.mxu0 0.0
      %730 = vmatpush1.msra.mxu0 0.0
      %731 = vmatprep.subr.mxu0 0.0
      %732 = vmatpush1.msra.mxu0 0.0
      %733 = vmatprep.subr.mxu0 0.0
      %734 = vmatpush1.msra.mxu0 0.0
      %735 = vmatprep.subr.mxu0 0.0
      %736 = vmatpush1.msra.mxu0 0.0
      %737 = vmatprep.subr.mxu0 0.0
      %738 = vmatpush1.msra.mxu0 0.0
      %739 = vmatprep.subr.mxu0 0.0
      %740 = vmatpush1.msra.mxu0 0.0
      %741 = vmatprep.subr.mxu0 0.0
      %742 = vmatpush1.msra.mxu0 0.0
      %743 = vmatprep.subr.mxu0 0.0
      %744 = vmatpush1.msra.mxu0 0.0
      %745 = vmatprep.subr.mxu0 0.0
      %746 = vmatpush1.msra.mxu0 0.0
      %747 = vmatprep.subr.mxu0 0.0
      %748 = vmatpush1.msra.mxu0 0.0
      %749 = vmatprep.subr.mxu0 0.0
      %750 = vmatpush1.msra.mxu0 0.0
      %751 = vmatprep.subr.mxu0 0.0
      %752 = vmatpush1.msra.mxu0 0.0
      %753 = vmatprep.subr.mxu0 0.0
      %754 = vmatpush1.msra.mxu0 0.0
      %755 = vmatprep.subr.mxu0 0.0
      %756 = vmatpush1.msra.mxu0 0.0
      %757 = vmatprep.subr.mxu0 0.0
      %758 = vmatpush1.msra.mxu0 0.0
      %759 = vmatprep.subr.mxu0 0.0
      %760 = vmatpush1.msra.mxu0 0.0
      %761 = vmatprep.mubr.f32.mxu0 0.0
      %762 = vmatmul.mubr.f32.gmra.mrb[0].mxu0 %v695
      %v763 = vpop.f32.mrb[0].mxu0
      %v764 = vadd.f32 %v672, %v763
      %v765 = vpop.f32.mrb[0].mxu0
      %766 = vdwg.mxu0
      %767 = vst [vmem:[%s254] sm:$0xff] %v764
      %p768 = scmp.lt.s32.totalorder %s17, 1
      %s769 = scalar_select %p768, %s17, 1
      %s770 = smul.addr %s769, 8
      %s771 = scalar_lea.vmem %s6, %s770
      // Predicated region
      $region45: #{_forward.1} parent=43 // pred_check
        %p772 = pneg %p166
      $region46: #{_forward.1} parent=43 // pred_check_branch
        %774 = sbr.rel (%p772) target = $region48
      $region47: #{_forward.1} parent=43 // pred_region
        _
      $region48: #{_forward.1} parent=43 // pred_fallthru
        _
    $region44: #{_forward.1} parent=5 // pred_fallthru
      _
    %p775 = scmp.le.s32.totalorder 2, %s12
    // Predicated region
    $region49: #{_forward.1} parent=5 // pred_check
      %p776 = pneg %p775
    $region50: #{_forward.1} parent=5 // pred_check_branch
      %778 = sbr.rel (%p776) target = $region52
    $region51: #{_forward.1} parent=5 // pred_region
      %s779 = ssub.s32 %s12, 2
      // Predicated region
      $region53: #{_forward.1} parent=51 // pred_check
        %p780 = pneg %p172
      $region54: #{_forward.1} parent=51 // pred_check_branch
        %782 = sbr.rel (%p780) target = $region56
      $region55: #{_forward.1} parent=51 // pred_region
        %p783 = scmp.lt.s32.totalorder %s18, 1
        %s784 = scalar_select %p783, %s18, 1
        %s785 = smul.addr %s784, 8
        %s786 = scalar_lea.vmem %s6, %s785
      $region56: #{_forward.1} parent=51 // pred_fallthru
        _
    $region52: #{_forward.1} parent=5 // pred_fallthru
      _
  $region6: #{_forward.1} parent=0 // loop_footer
    %s16 = sadd.s32 1, %s12
  $region7: #{_forward.1} parent=0 // loop_footer_branch
    %11 = sbr.rel target = $region3
  $region8: #{_forward.1} parent=0 // loop_exit
    _

</llo_original>
